<compile_context>
chip_gen: v7x
topology: tpu7x:2x2x1
jax: 0.10.0
libtpu: 0.0.40
codegen_flags: <defaults>
</compile_context>

<pallas_src>
import jax
import jax.numpy as jnp
from jax.experimental import pallas as pl
from jax.experimental.pallas import tpu as pltpu

INPUT_SIZE = 5
H1, H2, OUT = 16, 8, 1
TAB_LANES = 128          # lane width of the packed weight/bias table
TB_DEFAULT = 16384       # batch tile (columns / lanes) -- amortizes grid overhead

# Column layout of the packed parameter table, shape (H1, TAB_LANES):
W1_COL = 0               # cols 0..4   : w1.T            (tab[j, k]     = w1[k, j])
W2_COL = 8               # cols 8..23  : w2.T in rows 0..7 (tab[j, 8+k] = w2[k, j])
B1_COL = 24              # col  24     : b1 (16 rows)
B2_COL = 25              # col  25     : b2 (rows 0..7)
W3_COL = 26              # col  26     : w3[:, 0] (rows 0..7)
B3_COL = 27              # col  27 row0: b3


def churn_kernel(xt_ref, tab_ref, ot_ref):
    # xt_ref : (INPUT_SIZE, TB) f32  -- batch along lanes
    # tab_ref: (H1, TAB_LANES) f32   -- packed weights/biases (VMEM resident)
    # ot_ref : (OUT, TB) f32         -- lane-dense output block
    xt = xt_ref[...]
    tb = xt.shape[-1]

    # ---- layer 1 (5 -> 16) + ReLU: 5 broadcast FMAs on the VPU ----
    h = jnp.broadcast_to(tab_ref[:, B1_COL:B1_COL + 1], (H1, tb))
    for k in range(INPUT_SIZE):                                   # static unroll
        h = h + tab_ref[:, W1_COL + k:W1_COL + k + 1] * xt[k:k + 1, :]
    h = jnp.maximum(h, 0.0)                                       # (16, TB)

    # ---- layer 2 (16 -> 8) + ReLU: 16 broadcast FMAs on the VPU (no MXU) ----
    g = jnp.broadcast_to(tab_ref[:H2, B2_COL:B2_COL + 1], (H2, tb))
    for k in range(H1):                                           # static unroll
        g = g + tab_ref[:H2, W2_COL + k:W2_COL + k + 1] * h[k:k + 1, :]
    g = jnp.maximum(g, 0.0)                                       # (8, TB)

    # ---- layer 3 (8 -> 1) + sigmoid: sublane reduction + EUP ----
    z = jnp.sum(g * tab_ref[:H2, W3_COL:W3_COL + 1], axis=0, keepdims=True)
    z = z + tab_ref[0:1, B3_COL:B3_COL + 1]                       # (1, TB)
    ot_ref[...] = jax.nn.sigmoid(z)                               # dense lane store


def _round_up(n, m):
    return ((n + m - 1) // m) * m


def _pack_table(params):
    w1, b1, w2, b2, w3, b3 = params
    tab = jnp.zeros((H1, TAB_LANES), jnp.float32)
    tab = tab.at[:, W1_COL:W1_COL + INPUT_SIZE].set(w1.T)
    tab = tab.at[:H2, W2_COL:W2_COL + H1].set(w2.T)
    tab = tab.at[:, B1_COL].set(b1)
    tab = tab.at[:H2, B2_COL].set(b2)
    tab = tab.at[:H2, W3_COL].set(w3[:, 0])
    tab = tab.at[0, B3_COL].set(b3[0])
    return tab


def churn_forward_pallas(x, params, tile_batch=TB_DEFAULT):
    """x: (B, INPUT_SIZE) float32.  Returns (B, 1) float32."""
    B = x.shape[0]

    # Batch-in-lanes layout; ideally the caller produces x already as (5, B) --
    # the transpose here is one tiny extra HBM pass (20 B/row).
    xt = jnp.transpose(x.astype(jnp.float32))           # (INPUT_SIZE, B)
    tab = _pack_table(params)

    TB = _round_up(min(tile_batch, B), 128)              # lane-dim tile, 128-aligned
    grid = (pl.cdiv(B, TB),)                              # ragged last block is masked

    cost = pl.CostEstimate(
        flops=B * (2 * INPUT_SIZE * H1 + 2 * H1 * H2 + 2 * H2),
        transcendentals=B,                                # one sigmoid per row
        bytes_accessed=B * (INPUT_SIZE + OUT) * 4 + H1 * TAB_LANES * 4,
    )

    out_t = pl.pallas_call(
        churn_kernel,
        out_shape=jax.ShapeDtypeStruct((OUT, B), jnp.float32),
        grid=grid,
        in_specs=[
            pl.BlockSpec((INPUT_SIZE, TB), lambda i: (0, i)),   # batch-tiled, lane-dense
            pl.BlockSpec((H1, TAB_LANES), lambda i: (0, 0)),    # resident param table
        ],
        out_specs=pl.BlockSpec((OUT, TB), lambda i: (0, i)),    # lane-dense output
        compiler_params=pltpu.CompilerParams(
            dimension_semantics=("parallel",),                  # v7x: 2 TCs split the batch
            vmem_limit_bytes=32 * 1024 * 1024,                  # room for TB=16384 tiles
        ),
        cost_estimate=cost,
    )(xt, tab)

    return jnp.reshape(out_t, (B, OUT))                   # (1, B) -> (B, 1), layout no-op


def churn_forward_ref(x, params):
    """Pure-JAX reference matching the PyTorch forward."""
    w1, b1, w2, b2, w3, b3 = params
    h = jnp.maximum(x @ w1 + b1, 0.0)
    h = jnp.maximum(h @ w2 + b2, 0.0)
    return jax.nn.sigmoid(h @ w3 + b3)


def init_params(key):
    ks = jax.random.split(key, 6)

    def lin(kw, kb, fan_in, fan_out):
        bound = 1.0 / jnp.sqrt(fan_in)
        w = jax.random.uniform(kw, (fan_in, fan_out), jnp.float32, -bound, bound)
        b = jax.random.uniform(kb, (fan_out,), jnp.float32, -bound, bound)
        return w, b

    w1, b1 = lin(ks[0], ks[1], INPUT_SIZE, H1)
    w2, b2 = lin(ks[2], ks[3], H1, H2)
    w3, b3 = lin(ks[4], ks[5], H2, OUT)
    return (w1, b1, w2, b2, w3, b3)


if __name__ == "__main__":
    key = jax.random.PRNGKey(0)
    pkey, xkey, xkey2 = jax.random.split(key, 3)
    params = init_params(pkey)

    # Small single-tile case (B=8 exercises the masked ragged lanes of one block).
    batch = 8
    x = jax.random.normal(xkey, (batch, INPUT_SIZE), jnp.float32)
    out = jax.block_until_ready(churn_forward_pallas(x, params))
    ref = jax.block_until_ready(churn_forward_ref(x, params))
    assert out.shape == (batch, 1), out.shape
    assert jnp.allclose(out, ref, atol=1e-5, rtol=1e-5)

    # Multi-step grid case (grid=2 with a ragged last block, no wrapper padding).
    batch2 = 200
    x2 = jax.random.normal(xkey2, (batch2, INPUT_SIZE), jnp.float32)
    out2 = jax.block_until_ready(churn_forward_pallas(x2, params, tile_batch=128))
    ref2 = jax.block_until_ready(churn_forward_ref(x2, params))
    assert out2.shape == (batch2, 1), out2.shape
    assert jnp.allclose(out2, ref2, atol=1e-5, rtol=1e-5)

    print("KERNEL_OK")
</pallas_src>

<mosaic_0001>
module attributes {stable_mosaic.version = 11 : i64} {
  func.func @churn_kernel(%arg0: i32, %arg1: memref<5x128xf32, #tpu.memory_space<vmem>>, %arg2: memref<16x128xf32, #tpu.memory_space<vmem>>, %arg3: memref<1x128xf32, #tpu.memory_space<vmem>>) attributes {dimension_semantics = [#tpu.dimension_semantics<parallel>], iteration_bounds = array<i64: 1>, scalar_prefetch = 0 : i64, scratch_operands = 0 : i64, tpu.core_type = #tpu.core_type<tc>, window_params = [{transform_indices = @transform_0, window_bounds = array<i64: 5, 128>}, {pipeline_mode = #tpu.pipeline_mode<synchronous>, transform_indices = @transform_1, window_bounds = array<i64: 16, 128>}, {transform_indices = @transform_2, window_bounds = array<i64: 1, 128>}]} {
    %c0 = arith.constant 0 : index
    %c0_0 = arith.constant 0 : index
    %0 = vector.load %arg1[%c0, %c0_0] : memref<5x128xf32, #tpu.memory_space<vmem>>, vector<5x128xf32>
    %c0_1 = arith.constant 0 : index
    %c24 = arith.constant 24 : index
    %1 = vector.load %arg2[%c0_1, %c24] : memref<16x128xf32, #tpu.memory_space<vmem>>, vector<16x1xf32>
    %2 = vector.shape_cast %1 : vector<16x1xf32> to vector<16x1xf32>
    %3 = vector.broadcast %2 : vector<16x1xf32> to vector<16x128xf32>
    %c0_2 = arith.constant 0 : index
    %c0_3 = arith.constant 0 : index
    %4 = vector.load %arg2[%c0_2, %c0_3] : memref<16x128xf32, #tpu.memory_space<vmem>>, vector<16x1xf32>
    %5 = vector.extract_strided_slice %0 {offsets = [0, 0], sizes = [1, 128], strides = [1, 1]} : vector<5x128xf32> to vector<1x128xf32>
    %6 = vector.broadcast %4 : vector<16x1xf32> to vector<16x128xf32>
    %7 = vector.broadcast %5 : vector<1x128xf32> to vector<16x128xf32>
    %8 = arith.mulf %6, %7 : vector<16x128xf32>
    %9 = arith.addf %3, %8 : vector<16x128xf32>
    %c0_4 = arith.constant 0 : index
    %c1 = arith.constant 1 : index
    %10 = vector.load %arg2[%c0_4, %c1] : memref<16x128xf32, #tpu.memory_space<vmem>>, vector<16x1xf32>
    %11 = vector.extract_strided_slice %0 {offsets = [1, 0], sizes = [1, 128], strides = [1, 1]} : vector<5x128xf32> to vector<1x128xf32>
    %12 = vector.broadcast %10 : vector<16x1xf32> to vector<16x128xf32>
    %13 = vector.broadcast %11 : vector<1x128xf32> to vector<16x128xf32>
    %14 = arith.mulf %12, %13 : vector<16x128xf32>
    %15 = arith.addf %9, %14 : vector<16x128xf32>
    %c0_5 = arith.constant 0 : index
    %c2 = arith.constant 2 : index
    %16 = vector.load %arg2[%c0_5, %c2] : memref<16x128xf32, #tpu.memory_space<vmem>>, vector<16x1xf32>
    %17 = vector.extract_strided_slice %0 {offsets = [2, 0], sizes = [1, 128], strides = [1, 1]} : vector<5x128xf32> to vector<1x128xf32>
    %18 = vector.broadcast %16 : vector<16x1xf32> to vector<16x128xf32>
    %19 = vector.broadcast %17 : vector<1x128xf32> to vector<16x128xf32>
    %20 = arith.mulf %18, %19 : vector<16x128xf32>
    %21 = arith.addf %15, %20 : vector<16x128xf32>
    %c0_6 = arith.constant 0 : index
    %c3 = arith.constant 3 : index
    %22 = vector.load %arg2[%c0_6, %c3] : memref<16x128xf32, #tpu.memory_space<vmem>>, vector<16x1xf32>
    %23 = vector.extract_strided_slice %0 {offsets = [3, 0], sizes = [1, 128], strides = [1, 1]} : vector<5x128xf32> to vector<1x128xf32>
    %24 = vector.broadcast %22 : vector<16x1xf32> to vector<16x128xf32>
    %25 = vector.broadcast %23 : vector<1x128xf32> to vector<16x128xf32>
    %26 = arith.mulf %24, %25 : vector<16x128xf32>
    %27 = arith.addf %21, %26 : vector<16x128xf32>
    %c0_7 = arith.constant 0 : index
    %c4 = arith.constant 4 : index
    %28 = vector.load %arg2[%c0_7, %c4] : memref<16x128xf32, #tpu.memory_space<vmem>>, vector<16x1xf32>
    %29 = vector.extract_strided_slice %0 {offsets = [4, 0], sizes = [1, 128], strides = [1, 1]} : vector<5x128xf32> to vector<1x128xf32>
    %30 = vector.broadcast %28 : vector<16x1xf32> to vector<16x128xf32>
    %31 = vector.broadcast %29 : vector<1x128xf32> to vector<16x128xf32>
    %32 = arith.mulf %30, %31 : vector<16x128xf32>
    %33 = arith.addf %27, %32 : vector<16x128xf32>
    %cst = arith.constant 0.000000e+00 : f32
    %34 = vector.broadcast %cst : f32 to vector<16x128xf32>
    %35 = arith.maximumf %33, %34 : vector<16x128xf32>
    %c0_8 = arith.constant 0 : index
    %c25 = arith.constant 25 : index
    %36 = vector.load %arg2[%c0_8, %c25] : memref<16x128xf32, #tpu.memory_space<vmem>>, vector<8x1xf32>
    %37 = vector.shape_cast %36 : vector<8x1xf32> to vector<8x1xf32>
    %38 = vector.broadcast %37 : vector<8x1xf32> to vector<8x128xf32>
    %c0_9 = arith.constant 0 : index
    %c8 = arith.constant 8 : index
    %39 = vector.load %arg2[%c0_9, %c8] : memref<16x128xf32, #tpu.memory_space<vmem>>, vector<8x1xf32>
    %40 = vector.extract_strided_slice %35 {offsets = [0, 0], sizes = [1, 128], strides = [1, 1]} : vector<16x128xf32> to vector<1x128xf32>
    %41 = vector.broadcast %39 : vector<8x1xf32> to vector<8x128xf32>
    %42 = vector.broadcast %40 : vector<1x128xf32> to vector<8x128xf32>
    %43 = arith.mulf %41, %42 : vector<8x128xf32>
    %44 = arith.addf %38, %43 : vector<8x128xf32>
    %c0_10 = arith.constant 0 : index
    %c9 = arith.constant 9 : index
    %45 = vector.load %arg2[%c0_10, %c9] : memref<16x128xf32, #tpu.memory_space<vmem>>, vector<8x1xf32>
    %46 = vector.extract_strided_slice %35 {offsets = [1, 0], sizes = [1, 128], strides = [1, 1]} : vector<16x128xf32> to vector<1x128xf32>
    %47 = vector.broadcast %45 : vector<8x1xf32> to vector<8x128xf32>
    %48 = vector.broadcast %46 : vector<1x128xf32> to vector<8x128xf32>
    %49 = arith.mulf %47, %48 : vector<8x128xf32>
    %50 = arith.addf %44, %49 : vector<8x128xf32>
    %c0_11 = arith.constant 0 : index
    %c10 = arith.constant 10 : index
    %51 = vector.load %arg2[%c0_11, %c10] : memref<16x128xf32, #tpu.memory_space<vmem>>, vector<8x1xf32>
    %52 = vector.extract_strided_slice %35 {offsets = [2, 0], sizes = [1, 128], strides = [1, 1]} : vector<16x128xf32> to vector<1x128xf32>
    %53 = vector.broadcast %51 : vector<8x1xf32> to vector<8x128xf32>
    %54 = vector.broadcast %52 : vector<1x128xf32> to vector<8x128xf32>
    %55 = arith.mulf %53, %54 : vector<8x128xf32>
    %56 = arith.addf %50, %55 : vector<8x128xf32>
    %c0_12 = arith.constant 0 : index
    %c11 = arith.constant 11 : index
    %57 = vector.load %arg2[%c0_12, %c11] : memref<16x128xf32, #tpu.memory_space<vmem>>, vector<8x1xf32>
    %58 = vector.extract_strided_slice %35 {offsets = [3, 0], sizes = [1, 128], strides = [1, 1]} : vector<16x128xf32> to vector<1x128xf32>
    %59 = vector.broadcast %57 : vector<8x1xf32> to vector<8x128xf32>
    %60 = vector.broadcast %58 : vector<1x128xf32> to vector<8x128xf32>
    %61 = arith.mulf %59, %60 : vector<8x128xf32>
    %62 = arith.addf %56, %61 : vector<8x128xf32>
    %c0_13 = arith.constant 0 : index
    %c12 = arith.constant 12 : index
    %63 = vector.load %arg2[%c0_13, %c12] : memref<16x128xf32, #tpu.memory_space<vmem>>, vector<8x1xf32>
    %64 = vector.extract_strided_slice %35 {offsets = [4, 0], sizes = [1, 128], strides = [1, 1]} : vector<16x128xf32> to vector<1x128xf32>
    %65 = vector.broadcast %63 : vector<8x1xf32> to vector<8x128xf32>
    %66 = vector.broadcast %64 : vector<1x128xf32> to vector<8x128xf32>
    %67 = arith.mulf %65, %66 : vector<8x128xf32>
    %68 = arith.addf %62, %67 : vector<8x128xf32>
    %c0_14 = arith.constant 0 : index
    %c13 = arith.constant 13 : index
    %69 = vector.load %arg2[%c0_14, %c13] : memref<16x128xf32, #tpu.memory_space<vmem>>, vector<8x1xf32>
    %70 = vector.extract_strided_slice %35 {offsets = [5, 0], sizes = [1, 128], strides = [1, 1]} : vector<16x128xf32> to vector<1x128xf32>
    %71 = vector.broadcast %69 : vector<8x1xf32> to vector<8x128xf32>
    %72 = vector.broadcast %70 : vector<1x128xf32> to vector<8x128xf32>
    %73 = arith.mulf %71, %72 : vector<8x128xf32>
    %74 = arith.addf %68, %73 : vector<8x128xf32>
    %c0_15 = arith.constant 0 : index
    %c14 = arith.constant 14 : index
    %75 = vector.load %arg2[%c0_15, %c14] : memref<16x128xf32, #tpu.memory_space<vmem>>, vector<8x1xf32>
    %76 = vector.extract_strided_slice %35 {offsets = [6, 0], sizes = [1, 128], strides = [1, 1]} : vector<16x128xf32> to vector<1x128xf32>
    %77 = vector.broadcast %75 : vector<8x1xf32> to vector<8x128xf32>
    %78 = vector.broadcast %76 : vector<1x128xf32> to vector<8x128xf32>
    %79 = arith.mulf %77, %78 : vector<8x128xf32>
    %80 = arith.addf %74, %79 : vector<8x128xf32>
    %c0_16 = arith.constant 0 : index
    %c15 = arith.constant 15 : index
    %81 = vector.load %arg2[%c0_16, %c15] : memref<16x128xf32, #tpu.memory_space<vmem>>, vector<8x1xf32>
    %82 = vector.extract_strided_slice %35 {offsets = [7, 0], sizes = [1, 128], strides = [1, 1]} : vector<16x128xf32> to vector<1x128xf32>
    %83 = vector.broadcast %81 : vector<8x1xf32> to vector<8x128xf32>
    %84 = vector.broadcast %82 : vector<1x128xf32> to vector<8x128xf32>
    %85 = arith.mulf %83, %84 : vector<8x128xf32>
    %86 = arith.addf %80, %85 : vector<8x128xf32>
    %c0_17 = arith.constant 0 : index
    %c16 = arith.constant 16 : index
    %87 = vector.load %arg2[%c0_17, %c16] : memref<16x128xf32, #tpu.memory_space<vmem>>, vector<8x1xf32>
    %88 = vector.extract_strided_slice %35 {offsets = [8, 0], sizes = [1, 128], strides = [1, 1]} : vector<16x128xf32> to vector<1x128xf32>
    %89 = vector.broadcast %87 : vector<8x1xf32> to vector<8x128xf32>
    %90 = vector.broadcast %88 : vector<1x128xf32> to vector<8x128xf32>
    %91 = arith.mulf %89, %90 : vector<8x128xf32>
    %92 = arith.addf %86, %91 : vector<8x128xf32>
    %c0_18 = arith.constant 0 : index
    %c17 = arith.constant 17 : index
    %93 = vector.load %arg2[%c0_18, %c17] : memref<16x128xf32, #tpu.memory_space<vmem>>, vector<8x1xf32>
    %94 = vector.extract_strided_slice %35 {offsets = [9, 0], sizes = [1, 128], strides = [1, 1]} : vector<16x128xf32> to vector<1x128xf32>
    %95 = vector.broadcast %93 : vector<8x1xf32> to vector<8x128xf32>
    %96 = vector.broadcast %94 : vector<1x128xf32> to vector<8x128xf32>
    %97 = arith.mulf %95, %96 : vector<8x128xf32>
    %98 = arith.addf %92, %97 : vector<8x128xf32>
    %c0_19 = arith.constant 0 : index
    %c18 = arith.constant 18 : index
    %99 = vector.load %arg2[%c0_19, %c18] : memref<16x128xf32, #tpu.memory_space<vmem>>, vector<8x1xf32>
    %100 = vector.extract_strided_slice %35 {offsets = [10, 0], sizes = [1, 128], strides = [1, 1]} : vector<16x128xf32> to vector<1x128xf32>
    %101 = vector.broadcast %99 : vector<8x1xf32> to vector<8x128xf32>
    %102 = vector.broadcast %100 : vector<1x128xf32> to vector<8x128xf32>
    %103 = arith.mulf %101, %102 : vector<8x128xf32>
    %104 = arith.addf %98, %103 : vector<8x128xf32>
    %c0_20 = arith.constant 0 : index
    %c19 = arith.constant 19 : index
    %105 = vector.load %arg2[%c0_20, %c19] : memref<16x128xf32, #tpu.memory_space<vmem>>, vector<8x1xf32>
    %106 = vector.extract_strided_slice %35 {offsets = [11, 0], sizes = [1, 128], strides = [1, 1]} : vector<16x128xf32> to vector<1x128xf32>
    %107 = vector.broadcast %105 : vector<8x1xf32> to vector<8x128xf32>
    %108 = vector.broadcast %106 : vector<1x128xf32> to vector<8x128xf32>
    %109 = arith.mulf %107, %108 : vector<8x128xf32>
    %110 = arith.addf %104, %109 : vector<8x128xf32>
    %c0_21 = arith.constant 0 : index
    %c20 = arith.constant 20 : index
    %111 = vector.load %arg2[%c0_21, %c20] : memref<16x128xf32, #tpu.memory_space<vmem>>, vector<8x1xf32>
    %112 = vector.extract_strided_slice %35 {offsets = [12, 0], sizes = [1, 128], strides = [1, 1]} : vector<16x128xf32> to vector<1x128xf32>
    %113 = vector.broadcast %111 : vector<8x1xf32> to vector<8x128xf32>
    %114 = vector.broadcast %112 : vector<1x128xf32> to vector<8x128xf32>
    %115 = arith.mulf %113, %114 : vector<8x128xf32>
    %116 = arith.addf %110, %115 : vector<8x128xf32>
    %c0_22 = arith.constant 0 : index
    %c21 = arith.constant 21 : index
    %117 = vector.load %arg2[%c0_22, %c21] : memref<16x128xf32, #tpu.memory_space<vmem>>, vector<8x1xf32>
    %118 = vector.extract_strided_slice %35 {offsets = [13, 0], sizes = [1, 128], strides = [1, 1]} : vector<16x128xf32> to vector<1x128xf32>
    %119 = vector.broadcast %117 : vector<8x1xf32> to vector<8x128xf32>
    %120 = vector.broadcast %118 : vector<1x128xf32> to vector<8x128xf32>
    %121 = arith.mulf %119, %120 : vector<8x128xf32>
    %122 = arith.addf %116, %121 : vector<8x128xf32>
    %c0_23 = arith.constant 0 : index
    %c22 = arith.constant 22 : index
    %123 = vector.load %arg2[%c0_23, %c22] : memref<16x128xf32, #tpu.memory_space<vmem>>, vector<8x1xf32>
    %124 = vector.extract_strided_slice %35 {offsets = [14, 0], sizes = [1, 128], strides = [1, 1]} : vector<16x128xf32> to vector<1x128xf32>
    %125 = vector.broadcast %123 : vector<8x1xf32> to vector<8x128xf32>
    %126 = vector.broadcast %124 : vector<1x128xf32> to vector<8x128xf32>
    %127 = arith.mulf %125, %126 : vector<8x128xf32>
    %128 = arith.addf %122, %127 : vector<8x128xf32>
    %c0_24 = arith.constant 0 : index
    %c23 = arith.constant 23 : index
    %129 = vector.load %arg2[%c0_24, %c23] : memref<16x128xf32, #tpu.memory_space<vmem>>, vector<8x1xf32>
    %130 = vector.extract_strided_slice %35 {offsets = [15, 0], sizes = [1, 128], strides = [1, 1]} : vector<16x128xf32> to vector<1x128xf32>
    %131 = vector.broadcast %129 : vector<8x1xf32> to vector<8x128xf32>
    %132 = vector.broadcast %130 : vector<1x128xf32> to vector<8x128xf32>
    %133 = arith.mulf %131, %132 : vector<8x128xf32>
    %134 = arith.addf %128, %133 : vector<8x128xf32>
    %cst_25 = arith.constant 0.000000e+00 : f32
    %135 = vector.broadcast %cst_25 : f32 to vector<8x128xf32>
    %136 = arith.maximumf %134, %135 : vector<8x128xf32>
    %c0_26 = arith.constant 0 : index
    %c26 = arith.constant 26 : index
    %137 = vector.load %arg2[%c0_26, %c26] : memref<16x128xf32, #tpu.memory_space<vmem>>, vector<8x1xf32>
    %138 = vector.broadcast %137 : vector<8x1xf32> to vector<8x128xf32>
    %139 = arith.mulf %136, %138 : vector<8x128xf32>
    %cst_27 = arith.constant dense<0.000000e+00> : vector<128xf32>
    %140 = vector.multi_reduction <add>, %139, %cst_27 [0] : vector<8x128xf32> to vector<128xf32>
    %141 = vector.shape_cast %140 : vector<128xf32> to vector<1x128xf32>
    %c0_28 = arith.constant 0 : index
    %c27 = arith.constant 27 : index
    %142 = vector.load %arg2[%c0_28, %c27] : memref<16x128xf32, #tpu.memory_space<vmem>>, vector<1x1xf32>
    %143 = vector.broadcast %142 : vector<1x1xf32> to vector<1x128xf32>
    %144 = arith.addf %141, %143 : vector<1x128xf32>
    %145 = arith.negf %144 : vector<1x128xf32>
    %146 = math.exp %145 : vector<1x128xf32>
    %cst_29 = arith.constant 1.000000e+00 : f32
    %147 = vector.broadcast %cst_29 : f32 to vector<1x128xf32>
    %148 = arith.addf %147, %146 : vector<1x128xf32>
    %149 = arith.divf %147, %148 : vector<1x128xf32>
    %c0_30 = arith.constant 0 : index
    %c0_31 = arith.constant 0 : index
    %150 = vector.load %arg3[%c0_30, %c0_31] : memref<1x128xf32, #tpu.memory_space<vmem>>, vector<1x128xf32>
    tpu.vector_store %arg3[%c0_30, %c0_31], %149 {strides = array<i32>} : memref<1x128xf32, #tpu.memory_space<vmem>>, vector<1x128xf32>,
    return
  }
  func.func @transform_0(%arg0: i32) -> (i32, i32) {
    %c0_i32 = arith.constant 0 : i32
    %c0_i32_0 = arith.constant 0 : i32
    return %c0_i32, %arg0 : i32, i32
  }
  func.func @transform_1(%arg0: i32) -> (i32, i32) {
    %c0_i32 = arith.constant 0 : i32
    %c0_i32_0 = arith.constant 0 : i32
    %c0_i32_1 = arith.constant 0 : i32
    return %c0_i32, %c0_i32_0 : i32, i32
  }
  func.func @transform_2(%arg0: i32) -> (i32, i32) {
    %c0_i32 = arith.constant 0 : i32
    %c0_i32_0 = arith.constant 0 : i32
    return %c0_i32, %arg0 : i32, i32
  }
}

</mosaic_0001>

<llo_original>
// kernel: tpu_custom_call.1
$region0: #{tpu_custom_call.1}
  #allocation0 [shape = 'u32[]', space=smem, size = 0x4, offset = 0x4, fixed_abs, tag = 'smem constant byte address 0x4 - core index']
  #allocation1 [shape = 'u32[144,128]{1,0:T(1,128)}', space=vmem, size = 0x12000, scoped, tag = 'internal scratch']
  %s0 = inlined_call_operand.hbm [shape: f32[5,8], index: 0, kind: input, shape index: {}]
  %s1 = inlined_call_operand.hbm [shape: f32[16,128], index: 1, kind: input, shape index: {}]
  %s2 = inlined_call_operand.hbm [shape: f32[1,8], index: 2, kind: output, shape index: {}]
  %s3 = sld [smem:[#allocation0]]
  $region26: #{tpu_custom_call.1} parent=0
    _
  %s5 = ssub.s32 1, %s3
  %s6 = scalar_select 0, %s5, %s3
  $region1: #{tpu_custom_call.1} parent=0
    #allocation2 [shape = 'u8[4096]{0}', space=vmem, size = 0x1000, scoped, tag = 'input window, operand 0, single buffered']
    #allocation3 [shape = 's32[1]{0}', space=sflag, size = 0x4, scoped, tag = 'scoped memory for tpu_custom_call.1']
    #allocation4 [shape = 's32[1]{0}', space=sflag, size = 0x4, scoped, tag = 'scoped memory for tpu_custom_call.1']
    #allocation5 [shape = 'u8[8192]{0}', space=vmem, size = 0x2000, scoped, tag = 'input window, operand 1, single buffered']
    #allocation6 [shape = 's32[1]{0}', space=sflag, size = 0x4, scoped, tag = 'scoped memory for tpu_custom_call.1']
    #allocation7 [shape = 'u8[512]{0}', space=vmem, size = 0x400, scoped, tag = 'output window, operand 0, single buffered']
    %7 = vsyncpa [#allocation3], 0
    %8 = vsyncpa [#allocation6], 0
    %9 = vsyncpa [#allocation4], 0
    // Predicated region
    $region2: #{tpu_custom_call.1} parent=1 // pred_check
      _
    $region3: #{tpu_custom_call.1} parent=1 // pred_check_branch
      %11 = sbr.rel (0) target = $region5
    $region4: #{tpu_custom_call.1} parent=1 // pred_region
      %s13 = ssub.s32 128, 128
      %14 = vsyncadd [#allocation3], %s13
      %s16 = sshll.u32 [#allocation2], 4
      %s17 = int_to_ptr.vmem [resolvable:$true] %s16
      %19 = dma.hbm_to_vmem [thread:$0]  %s0, 128, %s17, [#allocation3]
    $region5: #{tpu_custom_call.1} parent=1 // pred_fallthru
      _
    // Predicated region
    $region6: #{tpu_custom_call.1} parent=1 // pred_check
      _
    $region7: #{tpu_custom_call.1} parent=1 // pred_check_branch
      %21 = sbr.rel (0) target = $region9
    $region8: #{tpu_custom_call.1} parent=1 // pred_region
      %s23 = ssub.s32 256, 256
      %24 = vsyncadd [#allocation6], %s23
      %s25 = sshll.u32 [#allocation5], 4
      %s26 = int_to_ptr.vmem [resolvable:$true] %s25
      %31 = dma.hbm_to_vmem [thread:$0]  %s1, 256, %s26, [#allocation6], 128, 128, 8
    $region9: #{tpu_custom_call.1} parent=1 // pred_fallthru
      _
    // Predicated region
    $region10: #{tpu_custom_call.1} parent=1 // pred_check
      _
    $region11: #{tpu_custom_call.1} parent=1 // pred_check_branch
      %33 = sbr.rel (0) target = $region13
    $region12: #{tpu_custom_call.1} parent=1 // pred_region
      %34 = dma.done [#allocation3], 128
    $region13: #{tpu_custom_call.1} parent=1 // pred_fallthru
      _
    // Predicated region
    $region14: #{tpu_custom_call.1} parent=1 // pred_check
      _
    $region15: #{tpu_custom_call.1} parent=1 // pred_check_branch
      %36 = sbr.rel (0) target = $region17
    $region16: #{tpu_custom_call.1} parent=1 // pred_region
      %37 = dma.done [#allocation6], 256
    $region17: #{tpu_custom_call.1} parent=1 // pred_fallthru
      _
    %v38 = vld [vmem:[#allocation2] sm:$0x1f]
    %v39 = vld [vmem:[#allocation5] sm:$0xff]
    %v40 = vld [vmem:[#allocation5 + $0x8] sm:$0xff]
    %42 = vset.pattern.permute.xlu0 24
    %43 = vperm.xlu0 %42, %v39
    %v44 = vpop.permute.xlu0 %43
    %47 = vset.pattern.permute.xlu0 24
    %48 = vperm.xlu0 %47, %v40
    %v49 = vpop.permute.xlu0 %48
    %51 = vset.pattern.permute.xlu0 0
    %52 = vperm.xlu0 %51, %v39
    %v53 = vpop.permute.xlu0 %52
    %55 = vset.pattern.permute.xlu0 0
    %56 = vperm.xlu0 %55, %v40
    %v57 = vpop.permute.xlu0 %56
    %v59 = vlaneseq
    %v60 = vshrl.u32 %v59, 7
    %v61 = vsub.s32 0, %v60
    %v62 = vrot.slane %v38, %v61
    %v63 = vmul.f32 %v53, %v62
    %v64 = vmul.f32 %v57, %v62
    %v65 = vadd.f32 %v44, %v63
    %v66 = vadd.f32 %v49, %v64
    %67 = vset.pattern.permute.xlu0 1
    %68 = vperm.xlu0 %67, %v39
    %v69 = vpop.permute.xlu0 %68
    %71 = vset.pattern.permute.xlu0 1
    %72 = vperm.xlu0 %71, %v40
    %v73 = vpop.permute.xlu0 %72
    %v75 = vlaneseq
    %v76 = vshrl.u32 %v75, 7
    %v77 = vsub.s32 1, %v76
    %v78 = vrot.slane %v38, %v77
    %v79 = vmul.f32 %v69, %v78
    %v80 = vmul.f32 %v73, %v78
    %v81 = vadd.f32 %v65, %v79
    %v82 = vadd.f32 %v66, %v80
    %83 = vset.pattern.permute.xlu0 2
    %84 = vperm.xlu0 %83, %v39
    %v85 = vpop.permute.xlu0 %84
    %87 = vset.pattern.permute.xlu0 2
    %88 = vperm.xlu0 %87, %v40
    %v89 = vpop.permute.xlu0 %88
    %v91 = vlaneseq
    %v92 = vshrl.u32 %v91, 7
    %v93 = vsub.s32 2, %v92
    %v94 = vrot.slane %v38, %v93
    %v95 = vmul.f32 %v85, %v94
    %v96 = vmul.f32 %v89, %v94
    %v97 = vadd.f32 %v81, %v95
    %v98 = vadd.f32 %v82, %v96
    %99 = vset.pattern.permute.xlu0 3
    %100 = vperm.xlu0 %99, %v39
    %v101 = vpop.permute.xlu0 %100
    %103 = vset.pattern.permute.xlu0 3
    %104 = vperm.xlu0 %103, %v40
    %v105 = vpop.permute.xlu0 %104
    %v107 = vlaneseq
    %v108 = vshrl.u32 %v107, 7
    %v109 = vsub.s32 3, %v108
    %v110 = vrot.slane %v38, %v109
    %v111 = vmul.f32 %v101, %v110
    %v112 = vmul.f32 %v105, %v110
    %v113 = vadd.f32 %v97, %v111
    %v114 = vadd.f32 %v98, %v112
    %115 = vset.pattern.permute.xlu0 4
    %116 = vperm.xlu0 %115, %v39
    %v117 = vpop.permute.xlu0 %116
    %119 = vset.pattern.permute.xlu0 4
    %120 = vperm.xlu0 %119, %v40
    %v121 = vpop.permute.xlu0 %120
    %v123 = vlaneseq
    %v124 = vshrl.u32 %v123, 7
    %v125 = vsub.s32 4, %v124
    %v126 = vrot.slane %v38, %v125
    %v127 = vmul.f32 %v117, %v126
    %v128 = vmul.f32 %v121, %v126
    %v129 = vadd.f32 %v113, %v127
    %v130 = vadd.f32 %v114, %v128
    %v131 = vmax.f32 %v129, 0.0
    %v132 = vmax.f32 %v130, 0.0
    %v133 = vld [vmem:[#allocation5] sm:$0xff]
    %135 = vset.pattern.permute.xlu0 25
    %136 = vperm.xlu0 %135, %v133
    %v137 = vpop.permute.xlu0 %136
    %139 = vset.pattern.permute.xlu0 8
    %140 = vperm.xlu0 %139, %v133
    %v141 = vpop.permute.xlu0 %140
    %v143 = vlaneseq
    %v144 = vshrl.u32 %v143, 7
    %v145 = vsub.s32 0, %v144
    %v146 = vrot.slane %v131, %v145
    %v147 = vmul.f32 %v141, %v146
    %v148 = vadd.f32 %v137, %v147
    %149 = vset.pattern.permute.xlu0 9
    %150 = vperm.xlu0 %149, %v133
    %v151 = vpop.permute.xlu0 %150
    %v153 = vlaneseq
    %v154 = vshrl.u32 %v153, 7
    %v155 = vsub.s32 1, %v154
    %v156 = vrot.slane %v131, %v155
    %v157 = vmul.f32 %v151, %v156
    %v158 = vadd.f32 %v148, %v157
    %159 = vset.pattern.permute.xlu0 10
    %160 = vperm.xlu0 %159, %v133
    %v161 = vpop.permute.xlu0 %160
    %v163 = vlaneseq
    %v164 = vshrl.u32 %v163, 7
    %v165 = vsub.s32 2, %v164
    %v166 = vrot.slane %v131, %v165
    %v167 = vmul.f32 %v161, %v166
    %v168 = vadd.f32 %v158, %v167
    %169 = vset.pattern.permute.xlu0 11
    %170 = vperm.xlu0 %169, %v133
    %v171 = vpop.permute.xlu0 %170
    %v173 = vlaneseq
    %v174 = vshrl.u32 %v173, 7
    %v175 = vsub.s32 3, %v174
    %v176 = vrot.slane %v131, %v175
    %v177 = vmul.f32 %v171, %v176
    %v178 = vadd.f32 %v168, %v177
    %179 = vset.pattern.permute.xlu0 12
    %180 = vperm.xlu0 %179, %v133
    %v181 = vpop.permute.xlu0 %180
    %v183 = vlaneseq
    %v184 = vshrl.u32 %v183, 7
    %v185 = vsub.s32 4, %v184
    %v186 = vrot.slane %v131, %v185
    %v187 = vmul.f32 %v181, %v186
    %v188 = vadd.f32 %v178, %v187
    %189 = vset.pattern.permute.xlu0 13
    %190 = vperm.xlu0 %189, %v133
    %v191 = vpop.permute.xlu0 %190
    %v193 = vlaneseq
    %v194 = vshrl.u32 %v193, 7
    %v195 = vsub.s32 5, %v194
    %v196 = vrot.slane %v131, %v195
    %v197 = vmul.f32 %v191, %v196
    %v198 = vadd.f32 %v188, %v197
    %199 = vset.pattern.permute.xlu0 14
    %200 = vperm.xlu0 %199, %v133
    %v201 = vpop.permute.xlu0 %200
    %v203 = vlaneseq
    %v204 = vshrl.u32 %v203, 7
    %v205 = vsub.s32 6, %v204
    %v206 = vrot.slane %v131, %v205
    %v207 = vmul.f32 %v201, %v206
    %v208 = vadd.f32 %v198, %v207
    %209 = vset.pattern.permute.xlu0 15
    %210 = vperm.xlu0 %209, %v133
    %v211 = vpop.permute.xlu0 %210
    %v213 = vlaneseq
    %v214 = vshrl.u32 %v213, 7
    %v215 = vsub.s32 7, %v214
    %v216 = vrot.slane %v131, %v215
    %v217 = vmul.f32 %v211, %v216
    %v218 = vadd.f32 %v208, %v217
    %219 = vset.pattern.permute.xlu0 16
    %220 = vperm.xlu0 %219, %v133
    %v221 = vpop.permute.xlu0 %220
    %v223 = vlaneseq
    %v224 = vshrl.u32 %v223, 7
    %v225 = vsub.s32 0, %v224
    %v226 = vrot.slane %v132, %v225
    %v227 = vmul.f32 %v221, %v226
    %v228 = vadd.f32 %v218, %v227
    %229 = vset.pattern.permute.xlu0 17
    %230 = vperm.xlu0 %229, %v133
    %v231 = vpop.permute.xlu0 %230
    %v233 = vlaneseq
    %v234 = vshrl.u32 %v233, 7
    %v235 = vsub.s32 1, %v234
    %v236 = vrot.slane %v132, %v235
    %v237 = vmul.f32 %v231, %v236
    %v238 = vadd.f32 %v228, %v237
    %239 = vset.pattern.permute.xlu0 18
    %240 = vperm.xlu0 %239, %v133
    %v241 = vpop.permute.xlu0 %240
    %v243 = vlaneseq
    %v244 = vshrl.u32 %v243, 7
    %v245 = vsub.s32 2, %v244
    %v246 = vrot.slane %v132, %v245
    %v247 = vmul.f32 %v241, %v246
    %v248 = vadd.f32 %v238, %v247
    %249 = vset.pattern.permute.xlu0 19
    %250 = vperm.xlu0 %249, %v133
    %v251 = vpop.permute.xlu0 %250
    %v253 = vlaneseq
    %v254 = vshrl.u32 %v253, 7
    %v255 = vsub.s32 3, %v254
    %v256 = vrot.slane %v132, %v255
    %v257 = vmul.f32 %v251, %v256
    %v258 = vadd.f32 %v248, %v257
    %259 = vset.pattern.permute.xlu0 20
    %260 = vperm.xlu0 %259, %v133
    %v261 = vpop.permute.xlu0 %260
    %v263 = vlaneseq
    %v264 = vshrl.u32 %v263, 7
    %v265 = vsub.s32 4, %v264
    %v266 = vrot.slane %v132, %v265
    %v267 = vmul.f32 %v261, %v266
    %v268 = vadd.f32 %v258, %v267
    %269 = vset.pattern.permute.xlu0 21
    %270 = vperm.xlu0 %269, %v133
    %v271 = vpop.permute.xlu0 %270
    %v273 = vlaneseq
    %v274 = vshrl.u32 %v273, 7
    %v275 = vsub.s32 5, %v274
    %v276 = vrot.slane %v132, %v275
    %v277 = vmul.f32 %v271, %v276
    %v278 = vadd.f32 %v268, %v277
    %279 = vset.pattern.permute.xlu0 22
    %280 = vperm.xlu0 %279, %v133
    %v281 = vpop.permute.xlu0 %280
    %v283 = vlaneseq
    %v284 = vshrl.u32 %v283, 7
    %v285 = vsub.s32 6, %v284
    %v286 = vrot.slane %v132, %v285
    %v287 = vmul.f32 %v281, %v286
    %v288 = vadd.f32 %v278, %v287
    %289 = vset.pattern.permute.xlu0 23
    %290 = vperm.xlu0 %289, %v133
    %v291 = vpop.permute.xlu0 %290
    %v293 = vlaneseq
    %v294 = vshrl.u32 %v293, 7
    %v295 = vsub.s32 7, %v294
    %v296 = vrot.slane %v132, %v295
    %v297 = vmul.f32 %v291, %v296
    %v298 = vadd.f32 %v288, %v297
    %v299 = vmax.f32 %v298, 0.0
    %300 = vset.pattern.permute.xlu0 26
    %301 = vperm.xlu0 %300, %v133
    %v302 = vpop.permute.xlu0 %301
    %v304 = vmul.f32 %v299, %v302
    %v305 = vrot.slane %v304, 4
    %v306 = vadd.f32 %v304, %v305
    %v307 = vrot.slane %v306, 2
    %v308 = vadd.f32 %v306, %v307
    %v309 = vrot.slane %v308, 1
    %v310 = vadd.f32 %v308, %v309
    %v311 = vld [vmem:[#allocation5] sm:$0x1]
    %313 = vset.pattern.permute.xlu0 27
    %314 = vperm.xlu0 %313, %v311
    %v315 = vpop.permute.xlu0 %314
    %v317 = vadd.f32 %v310, %v315
    %v318 = vxor.u32 %v317, 2147483648
    %v319 = vmul.f32 %v318, 1.442695
    %v320 = vpow.pop %v319
    %v321 = vadd.f32 %v320, 1.0
    %v322 = vrcp.pop %v321
    %v323 = vmul.f32 1.0, %v322
    %324 = vst [vmem:[#allocation7] sm:$0x1] %v323
    // Predicated region
    $region18: #{tpu_custom_call.1} parent=1 // pred_check
      _
    $region19: #{tpu_custom_call.1} parent=1 // pred_check_branch
      %326 = sbr.rel (0) target = $region21
    $region20: #{tpu_custom_call.1} parent=1 // pred_region
      %s328 = ssub.s32 16, 16
      %329 = vsyncadd [#allocation4], %s328
      %s331 = sshll.u32 [#allocation7], 4
      %s332 = int_to_ptr.vmem [resolvable:$true] %s331
      %334 = dma.vmem_to_hbm [thread:$0]  %s332, 16, %s2, [#allocation4]
    $region21: #{tpu_custom_call.1} parent=1 // pred_fallthru
      _
    // Predicated region
    $region22: #{tpu_custom_call.1} parent=1 // pred_check
      _
    $region23: #{tpu_custom_call.1} parent=1 // pred_check_branch
      %336 = sbr.rel (0) target = $region25
    $region24: #{tpu_custom_call.1} parent=1 // pred_region
      %337 = dma.done [#allocation4], 16
    $region25: #{tpu_custom_call.1} parent=1 // pred_fallthru
      _
    %338 = vsyncpa [#allocation3], 1
    %339 = vsyncpa [#allocation6], 1
    %340 = vsyncpa [#allocation4], 1

</llo_original>
